<compile_context>
chip_gen: v7x
topology: tpu7x:2x2x1
jax: 0.10.0
libtpu: 0.0.40
codegen_flags: <defaults>
</compile_context>

<pallas_src>
import functools

import jax
import jax.numpy as jnp
from jax.experimental import pallas as pl
from jax.experimental.pallas import tpu as pltpu


def _cheby_kernel(x_ref, w_ref, bias_ref, o_ref, *, degree):
    # x_ref:    (TBP, P*I)            input dtype (cast to f32 at load)
    # w_ref:    (degree+1, P*I, P*O)  f32, block-diagonal per degree
    # bias_ref: (1, P*O)              f32, T_0 contribution
    # o_ref:    (TBP, P*O)            f32
    x = x_ref[...].astype(jnp.float32)

    # T_0 term precomputed in the wrapper -> just broadcast the bias row.
    acc = jnp.broadcast_to(bias_ref[...], o_ref.shape)

    if degree >= 1:
        t_cur = x
        acc = acc + jnp.dot(t_cur, w_ref[1], preferred_element_type=jnp.float32)
        t_prev = None
        # Static (unrolled) recurrence: T_d = 2*x*T_{d-1} - T_{d-2}
        for d in range(2, degree + 1):
            if d == 2:
                t_next = 2.0 * x * t_cur - 1.0        # T_0 == 1
            else:
                t_next = 2.0 * x * t_cur - t_prev
            acc = acc + jnp.dot(
                t_next, w_ref[d], preferred_element_type=jnp.float32
            )
            t_prev, t_cur = t_cur, t_next

    o_ref[...] = acc.astype(o_ref.dtype)


def chebyshev_layer(x, cheby_coeffs, degree, *, tile_rows=8192):
    """Forward pass of ChebyshevLayer.

    Args:
      x: array whose total size is a multiple of input_dim; reshaped to
         (-1, input_dim) exactly like torch.reshape(x, (-1, input_dim)).
         Kept in its native dtype (cast to f32 inside the kernel).
      cheby_coeffs: (input_dim, output_dim, degree+1) float32 parameters.
      degree: polynomial degree (static python int).
      tile_rows: target original-sample rows per grid step (sweep 2048-16384).
    Returns:
      (B, output_dim) float32, B = x.size // input_dim.
    """
    input_dim, output_dim, dp1 = cheby_coeffs.shape
    assert dp1 == degree + 1
    assert x.size % input_dim == 0
    b = x.size // input_dim

    # Lane-packing factor: P consecutive samples share one 128-lane row.
    pack = 128 // input_dim if (input_dim <= 128 and 128 % input_dim == 0) else 1
    while pack > 1 and b % pack != 0:
        pack //= 2
    # TODO(synk): input_dims that do not divide 128 fall back to pack=1
    # (correct but lane-sparse); zero-padded weights could recover density.

    bp = b // pack            # packed batch rows
    ip = pack * input_dim     # packed input lanes
    op = pack * output_dim    # packed output lanes

    # Byte-identical row-major view of torch.reshape(x, (-1, input_dim)).
    xp = jnp.reshape(x, (bp, ip))

    # Per-degree weights, block-diagonal in the packed layout: (D+1, P*I, P*O).
    w = jnp.transpose(cheby_coeffs, (2, 0, 1)).astype(jnp.float32)  # (D+1, I, O)
    if pack > 1:
        eye = jnp.eye(pack, dtype=jnp.float32)
        w = jnp.einsum("pq,dio->dpiqo", eye, w).reshape(dp1, ip, op)

    # T_0 contribution: bias[o] = sum_i coeffs[i, o, 0], tiled across P copies.
    bias = jnp.sum(cheby_coeffs[:, :, 0].astype(jnp.float32), axis=0)
    bias = jnp.tile(bias, pack).reshape(1, op)

    # Packed-row tile: multiple of 8 sublanes, capped so the double-buffered
    # in+out footprint stays a few MiB, and so large batches get >= 4 grid
    # steps (pipelining overlap + 2-TensorCore split on v7x).
    tbp = min(max(tile_rows // pack, 8), 2048)
    if bp >= 32:
        tbp = min(tbp, bp // 4)
    tbp = min(tbp, bp)
    tbp = max(8, (tbp // 8) * 8)

    grid = (pl.cdiv(bp, tbp),)  # partial last block handled by masked writeback

    out = pl.pallas_call(
        functools.partial(_cheby_kernel, degree=degree),
        out_shape=jax.ShapeDtypeStruct((bp, op), jnp.float32),
        grid=grid,
        in_specs=[
            pl.BlockSpec((tbp, ip), lambda i: (i, 0)),
            # Constant block index -> stays resident in VMEM across steps.
            pl.BlockSpec((dp1, ip, op), lambda i: (0, 0, 0)),
            pl.BlockSpec((1, op), lambda i: (0, 0)),
        ],
        out_specs=pl.BlockSpec((tbp, op), lambda i: (i, 0)),
        compiler_params=pltpu.CompilerParams(
            dimension_semantics=("parallel",),  # v7x: shards batch over 2 TCs
            vmem_limit_bytes=32 * 1024 * 1024,
        ),
    )(xp, w, bias)

    # (B/P, P*O) row-major is byte-identical to (B, O).
    return jnp.reshape(out, (b, output_dim))


def _reference(x, cheby_coeffs, degree):
    input_dim = cheby_coeffs.shape[0]
    x2 = jnp.reshape(x, (-1, input_dim)).astype(jnp.float32)
    ts = [jnp.ones_like(x2)]
    if degree >= 1:
        ts.append(x2)
    for _ in range(2, degree + 1):
        ts.append(2.0 * x2 * ts[-1] - ts[-2])
    cheby = jnp.stack(ts, axis=-1)  # (B, I, D+1)
    return jnp.einsum("bid,iod->bo", cheby, cheby_coeffs)


if __name__ == "__main__":
    input_dim, output_dim, degree = 16, 32, 4

    key = jax.random.PRNGKey(0)
    kc, kx1, kx2, kx3 = jax.random.split(key, 4)

    # Deterministic parameter init, matching
    # nn.init.normal_(mean=0, std=1/(input_dim*(degree+1))).
    std = 1.0 / (input_dim * (degree + 1))
    cheby_coeffs = std * jax.random.normal(
        kc, (input_dim, output_dim, degree + 1), dtype=jnp.float32
    )

    # Check 1: (2, 32, 16) -> 64 samples; pack=8 (lane-dense 128/256 layout).
    x1 = jax.random.normal(kx1, (2, 32, input_dim), dtype=jnp.float32)
    y1 = jax.block_until_ready(chebyshev_layer(x1, cheby_coeffs, degree))
    r1 = _reference(x1, cheby_coeffs, degree)
    assert y1.shape == (64, output_dim)
    assert jnp.allclose(y1, r1, atol=1e-5, rtol=1e-5)

    # Check 2: (3, 3, 8, 16) -> 72 samples; pack=8, 9 packed rows -> 2 grid
    # steps with a partial last block (exercises masked writeback, no padding).
    x2 = jax.random.normal(kx2, (3, 3, 8, input_dim), dtype=jnp.float32)
    y2 = jax.block_until_ready(chebyshev_layer(x2, cheby_coeffs, degree))
    r2 = _reference(x2, cheby_coeffs, degree)
    assert y2.shape == (72, output_dim)
    assert jnp.allclose(y2, r2, atol=1e-5, rtol=1e-5)

    # Check 3: 68 samples (pack falls back to 4), bf16 input kept in native
    # dtype through the BlockSpec and cast to f32 inside the kernel.
    x3 = jax.random.normal(kx3, (68, input_dim), dtype=jnp.float32).astype(
        jnp.bfloat16
    )
    y3 = jax.block_until_ready(chebyshev_layer(x3, cheby_coeffs, degree))
    r3 = _reference(x3.astype(jnp.float32), cheby_coeffs, degree)
    assert y3.shape == (68, output_dim)
    assert jnp.allclose(y3, r3, atol=1e-4, rtol=1e-4)

    print("KERNEL_OK")
</pallas_src>

<mosaic_0001>
module attributes {stable_mosaic.version = 11 : i64} {
  func.func @_cheby_kernel(%arg0: i32, %arg1: memref<8x128xf32, #tpu.memory_space<vmem>>, %arg2: memref<5x128x256xf32, #tpu.memory_space<vmem>>, %arg3: memref<1x256xf32, #tpu.memory_space<vmem>>, %arg4: memref<8x256xf32, #tpu.memory_space<vmem>>) attributes {dimension_semantics = [#tpu.dimension_semantics<parallel>], iteration_bounds = array<i64: 1>, scalar_prefetch = 0 : i64, scratch_operands = 0 : i64, tpu.core_type = #tpu.core_type<tc>, window_params = [{transform_indices = @transform_0, window_bounds = array<i64: 8, 128>}, {pipeline_mode = #tpu.pipeline_mode<synchronous>, transform_indices = @transform_1, window_bounds = array<i64: 5, 128, 256>}, {pipeline_mode = #tpu.pipeline_mode<synchronous>, transform_indices = @transform_2, window_bounds = array<i64: 1, 256>}, {transform_indices = @transform_3, window_bounds = array<i64: 8, 256>}]} {
    %c0 = arith.constant 0 : index
    %c0_0 = arith.constant 0 : index
    %0 = vector.load %arg1[%c0, %c0_0] : memref<8x128xf32, #tpu.memory_space<vmem>>, vector<8x128xf32>
    %c0_1 = arith.constant 0 : index
    %c0_2 = arith.constant 0 : index
    %1 = vector.load %arg3[%c0_1, %c0_2] : memref<1x256xf32, #tpu.memory_space<vmem>>, vector<1x256xf32>
    %2 = vector.shape_cast %1 : vector<1x256xf32> to vector<1x256xf32>
    %3 = vector.broadcast %2 : vector<1x256xf32> to vector<8x256xf32>
    %c1 = arith.constant 1 : index
    %c0_3 = arith.constant 0 : index
    %c0_4 = arith.constant 0 : index
    %4 = vector.load %arg2[%c1, %c0_3, %c0_4] : memref<5x128x256xf32, #tpu.memory_space<vmem>>, vector<1x128x256xf32>
    %5 = vector.shape_cast %4 : vector<1x128x256xf32> to vector<128x256xf32>
    %cst = arith.constant dense<0.000000e+00> : vector<8x256xf32>
    %6 = tpu.matmul %0, %5, %cst {dimension_numbers = #tpu.dot_dimension_numbers<[1], [0], [0], [1], [0, 0, 1, 1], [], []>} : vector<8x128xf32>, vector<128x256xf32>, vector<8x256xf32> -> vector<8x256xf32>
    %7 = arith.addf %3, %6 : vector<8x256xf32>
    %cst_5 = arith.constant 2.000000e+00 : f32
    %8 = vector.broadcast %cst_5 : f32 to vector<8x128xf32>
    %9 = arith.mulf %8, %0 : vector<8x128xf32>
    %10 = arith.mulf %9, %0 : vector<8x128xf32>
    %cst_6 = arith.constant 1.000000e+00 : f32
    %11 = vector.broadcast %cst_6 : f32 to vector<8x128xf32>
    %12 = arith.subf %10, %11 : vector<8x128xf32>
    %c2 = arith.constant 2 : index
    %c0_7 = arith.constant 0 : index
    %c0_8 = arith.constant 0 : index
    %13 = vector.load %arg2[%c2, %c0_7, %c0_8] : memref<5x128x256xf32, #tpu.memory_space<vmem>>, vector<1x128x256xf32>
    %14 = vector.shape_cast %13 : vector<1x128x256xf32> to vector<128x256xf32>
    %cst_9 = arith.constant dense<0.000000e+00> : vector<8x256xf32>
    %15 = tpu.matmul %12, %14, %cst_9 {dimension_numbers = #tpu.dot_dimension_numbers<[1], [0], [0], [1], [0, 0, 1, 1], [], []>} : vector<8x128xf32>, vector<128x256xf32>, vector<8x256xf32> -> vector<8x256xf32>
    %16 = arith.addf %7, %15 : vector<8x256xf32>
    %cst_10 = arith.constant 2.000000e+00 : f32
    %17 = vector.broadcast %cst_10 : f32 to vector<8x128xf32>
    %18 = arith.mulf %17, %0 : vector<8x128xf32>
    %19 = arith.mulf %18, %12 : vector<8x128xf32>
    %20 = arith.subf %19, %0 : vector<8x128xf32>
    %c3 = arith.constant 3 : index
    %c0_11 = arith.constant 0 : index
    %c0_12 = arith.constant 0 : index
    %21 = vector.load %arg2[%c3, %c0_11, %c0_12] : memref<5x128x256xf32, #tpu.memory_space<vmem>>, vector<1x128x256xf32>
    %22 = vector.shape_cast %21 : vector<1x128x256xf32> to vector<128x256xf32>
    %cst_13 = arith.constant dense<0.000000e+00> : vector<8x256xf32>
    %23 = tpu.matmul %20, %22, %cst_13 {dimension_numbers = #tpu.dot_dimension_numbers<[1], [0], [0], [1], [0, 0, 1, 1], [], []>} : vector<8x128xf32>, vector<128x256xf32>, vector<8x256xf32> -> vector<8x256xf32>
    %24 = arith.addf %16, %23 : vector<8x256xf32>
    %cst_14 = arith.constant 2.000000e+00 : f32
    %25 = vector.broadcast %cst_14 : f32 to vector<8x128xf32>
    %26 = arith.mulf %25, %0 : vector<8x128xf32>
    %27 = arith.mulf %26, %20 : vector<8x128xf32>
    %28 = arith.subf %27, %12 : vector<8x128xf32>
    %c4 = arith.constant 4 : index
    %c0_15 = arith.constant 0 : index
    %c0_16 = arith.constant 0 : index
    %29 = vector.load %arg2[%c4, %c0_15, %c0_16] : memref<5x128x256xf32, #tpu.memory_space<vmem>>, vector<1x128x256xf32>
    %30 = vector.shape_cast %29 : vector<1x128x256xf32> to vector<128x256xf32>
    %cst_17 = arith.constant dense<0.000000e+00> : vector<8x256xf32>
    %31 = tpu.matmul %28, %30, %cst_17 {dimension_numbers = #tpu.dot_dimension_numbers<[1], [0], [0], [1], [0, 0, 1, 1], [], []>} : vector<8x128xf32>, vector<128x256xf32>, vector<8x256xf32> -> vector<8x256xf32>
    %32 = arith.addf %24, %31 : vector<8x256xf32>
    %c0_18 = arith.constant 0 : index
    %c0_19 = arith.constant 0 : index
    %33 = vector.load %arg4[%c0_18, %c0_19] : memref<8x256xf32, #tpu.memory_space<vmem>>, vector<8x256xf32>
    tpu.vector_store %arg4[%c0_18, %c0_19], %32 {strides = array<i32>} : memref<8x256xf32, #tpu.memory_space<vmem>>, vector<8x256xf32>,
    return
  }
  func.func @transform_0(%arg0: i32) -> (i32, i32) {
    %c0_i32 = arith.constant 0 : i32
    %c0_i32_0 = arith.constant 0 : i32
    return %arg0, %c0_i32 : i32, i32
  }
  func.func @transform_1(%arg0: i32) -> (i32, i32, i32) {
    %c0_i32 = arith.constant 0 : i32
    %c0_i32_0 = arith.constant 0 : i32
    %c0_i32_1 = arith.constant 0 : i32
    %c0_i32_2 = arith.constant 0 : i32
    return %c0_i32, %c0_i32_0, %c0_i32_1 : i32, i32, i32
  }
  func.func @transform_2(%arg0: i32) -> (i32, i32) {
    %c0_i32 = arith.constant 0 : i32
    %c0_i32_0 = arith.constant 0 : i32
    %c0_i32_1 = arith.constant 0 : i32
    return %c0_i32, %c0_i32_0 : i32, i32
  }
  func.func @transform_3(%arg0: i32) -> (i32, i32) {
    %c0_i32 = arith.constant 0 : i32
    %c0_i32_0 = arith.constant 0 : i32
    return %arg0, %c0_i32 : i32, i32
  }
}

</mosaic_0001>

<llo_original>
// kernel: tpu_custom_call.1
$region0: #{tpu_custom_call.1}
  #allocation0 [shape = 'u32[]', space=smem, size = 0x4, offset = 0x4, fixed_abs, tag = 'smem constant byte address 0x4 - core index']
  #allocation1 [shape = 'u32[144,128]{1,0:T(1,128)}', space=vmem, size = 0x12000, scoped, tag = 'internal scratch']
  %s0 = inlined_call_operand.hbm [shape: f32[8,128], index: 0, kind: input, shape index: {}]
  %s1 = inlined_call_operand.hbm [shape: f32[5,128,256], index: 1, kind: input, shape index: {}]
  %s2 = inlined_call_operand.vmem [shape: f32[1,256], index: 2, kind: input, shape index: {}]
  %s3 = inlined_call_operand.hbm [shape: f32[8,256], index: 3, kind: output, shape index: {}]
  %s4 = sld [smem:[#allocation0]]
  $region30: #{tpu_custom_call.1} parent=0
    _
  %s6 = ssub.s32 1, %s4
  %s7 = scalar_select 0, %s6, %s4
  $region1: #{tpu_custom_call.1} parent=0
    #allocation2 [shape = 'u8[4096]{0}', space=vmem, size = 0x1000, scoped, tag = 'input window, operand 0, single buffered']
    #allocation3 [shape = 's32[1]{0}', space=sflag, size = 0x4, scoped, tag = 'scoped memory for tpu_custom_call.1']
    #allocation4 [shape = 's32[1]{0}', space=sflag, size = 0x4, scoped, tag = 'scoped memory for tpu_custom_call.1']
    #allocation5 [shape = 'u8[655360]{0}', space=vmem, size = 0xa0000, scoped, tag = 'input window, operand 1, single buffered']
    #allocation6 [shape = 's32[1]{0}', space=sflag, size = 0x4, scoped, tag = 'scoped memory for tpu_custom_call.1']
    #allocation7 [shape = 'u8[8192]{0}', space=vmem, size = 0x2000, scoped, tag = 'output window, operand 0, single buffered']
    %8 = vsyncpa [#allocation3], 0
    %9 = vsyncpa [#allocation6], 0
    %10 = vsyncpa [#allocation4], 0
    // Predicated region
    $region2: #{tpu_custom_call.1} parent=1 // pred_check
      _
    $region3: #{tpu_custom_call.1} parent=1 // pred_check_branch
      %12 = sbr.rel (0) target = $region5
    $region4: #{tpu_custom_call.1} parent=1 // pred_region
      %s14 = ssub.s32 128, 128
      %15 = vsyncadd [#allocation3], %s14
      %s17 = sshll.u32 [#allocation2], 4
      %s18 = int_to_ptr.vmem [resolvable:$true] %s17
      %20 = dma.hbm_to_vmem [thread:$0]  %s0, 128, %s18, [#allocation3]
    $region5: #{tpu_custom_call.1} parent=1 // pred_fallthru
      _
    // Predicated region
    $region6: #{tpu_custom_call.1} parent=1 // pred_check
      _
    $region7: #{tpu_custom_call.1} parent=1 // pred_check_branch
      %22 = sbr.rel (0) target = $region9
    $region8: #{tpu_custom_call.1} parent=1 // pred_region
      %s24 = ssub.s32 20480, 20480
      %25 = vsyncadd [#allocation6], %s24
      %s26 = sshll.u32 [#allocation5], 4
      %s27 = int_to_ptr.vmem [resolvable:$true] %s26
      %32 = dma.hbm_to_vmem [thread:$0]  %s1, 20480, %s27, [#allocation6], 256, 256, 16
    $region9: #{tpu_custom_call.1} parent=1 // pred_fallthru
      _
    // Predicated region
    $region10: #{tpu_custom_call.1} parent=1 // pred_check
      _
    $region11: #{tpu_custom_call.1} parent=1 // pred_check_branch
      %34 = sbr.rel (0) target = $region13
    $region12: #{tpu_custom_call.1} parent=1 // pred_region
      _
    $region13: #{tpu_custom_call.1} parent=1 // pred_fallthru
      _
    // Predicated region
    $region14: #{tpu_custom_call.1} parent=1 // pred_check
      _
    $region15: #{tpu_custom_call.1} parent=1 // pred_check_branch
      %36 = sbr.rel (0) target = $region17
    $region16: #{tpu_custom_call.1} parent=1 // pred_region
      %37 = dma.done [#allocation3], 128
    $region17: #{tpu_custom_call.1} parent=1 // pred_fallthru
      _
    // Predicated region
    $region18: #{tpu_custom_call.1} parent=1 // pred_check
      _
    $region19: #{tpu_custom_call.1} parent=1 // pred_check_branch
      %39 = sbr.rel (0) target = $region21
    $region20: #{tpu_custom_call.1} parent=1 // pred_region
      %40 = dma.done [#allocation6], 20480
    $region21: #{tpu_custom_call.1} parent=1 // pred_fallthru
      _
    %v41 = vld [vmem:[#allocation2] sm:$0xff]
    %v42 = vld [vmem:[%s2] sm:$0x3]
    %v44 = vlaneseq
    %v45 = vshrl.u32 %v44, 7
    %v46 = vsub.s32 0, %v45
    %v47 = vrot.slane %v42, %v46
    %v48 = vlaneseq
    %v49 = vshrl.u32 %v48, 7
    %v50 = vsub.s32 1, %v49
    %v51 = vrot.slane %v42, %v50
    %s54 = scalar_lea.vmem [#allocation5], 256
    %v55 = vld [vmem:[%s54] sm:$0xff]
    %v56 = vld [vmem:[%s54 + $0x8] sm:$0xff]
    %v57 = vld [vmem:[%s54 + $0x10] sm:$0xff]
    %v58 = vld [vmem:[%s54 + $0x18] sm:$0xff]
    %v59 = vld [vmem:[%s54 + $0x20] sm:$0xff]
    %v60 = vld [vmem:[%s54 + $0x28] sm:$0xff]
    %v61 = vld [vmem:[%s54 + $0x30] sm:$0xff]
    %v62 = vld [vmem:[%s54 + $0x38] sm:$0xff]
    %v63 = vld [vmem:[%s54 + $0x40] sm:$0xff]
    %v64 = vld [vmem:[%s54 + $0x48] sm:$0xff]
    %v65 = vld [vmem:[%s54 + $0x50] sm:$0xff]
    %v66 = vld [vmem:[%s54 + $0x58] sm:$0xff]
    %v67 = vld [vmem:[%s54 + $0x60] sm:$0xff]
    %v68 = vld [vmem:[%s54 + $0x68] sm:$0xff]
    %v69 = vld [vmem:[%s54 + $0x70] sm:$0xff]
    %v70 = vld [vmem:[%s54 + $0x78] sm:$0xff]
    %v71 = vld [vmem:[%s54 + $0x80] sm:$0xff]
    %v72 = vld [vmem:[%s54 + $0x88] sm:$0xff]
    %v73 = vld [vmem:[%s54 + $0x90] sm:$0xff]
    %v74 = vld [vmem:[%s54 + $0x98] sm:$0xff]
    %v75 = vld [vmem:[%s54 + $0xa0] sm:$0xff]
    %v76 = vld [vmem:[%s54 + $0xa8] sm:$0xff]
    %v77 = vld [vmem:[%s54 + $0xb0] sm:$0xff]
    %v78 = vld [vmem:[%s54 + $0xb8] sm:$0xff]
    %v79 = vld [vmem:[%s54 + $0xc0] sm:$0xff]
    %v80 = vld [vmem:[%s54 + $0xc8] sm:$0xff]
    %v81 = vld [vmem:[%s54 + $0xd0] sm:$0xff]
    %v82 = vld [vmem:[%s54 + $0xd8] sm:$0xff]
    %v83 = vld [vmem:[%s54 + $0xe0] sm:$0xff]
    %v84 = vld [vmem:[%s54 + $0xe8] sm:$0xff]
    %v85 = vld [vmem:[%s54 + $0xf0] sm:$0xff]
    %v86 = vld [vmem:[%s54 + $0xf8] sm:$0xff]
    %87 = vmatprep.subr.mxu0 %v56
    %88 = vmatpush1.msra.mxu0 %v55
    %89 = vmatprep.subr.mxu0 %v58
    %90 = vmatpush1.msra.mxu0 %v57
    %91 = vmatprep.subr.mxu0 %v60
    %92 = vmatpush1.msra.mxu0 %v59
    %93 = vmatprep.subr.mxu0 %v62
    %94 = vmatpush1.msra.mxu0 %v61
    %95 = vmatprep.subr.mxu0 %v64
    %96 = vmatpush1.msra.mxu0 %v63
    %97 = vmatprep.subr.mxu0 %v66
    %98 = vmatpush1.msra.mxu0 %v65
    %99 = vmatprep.subr.mxu0 %v68
    %100 = vmatpush1.msra.mxu0 %v67
    %101 = vmatprep.subr.mxu0 %v70
    %102 = vmatpush1.msra.mxu0 %v69
    %103 = vmatprep.subr.mxu0 %v72
    %104 = vmatpush1.msra.mxu0 %v71
    %105 = vmatprep.subr.mxu0 %v74
    %106 = vmatpush1.msra.mxu0 %v73
    %107 = vmatprep.subr.mxu0 %v76
    %108 = vmatpush1.msra.mxu0 %v75
    %109 = vmatprep.subr.mxu0 %v78
    %110 = vmatpush1.msra.mxu0 %v77
    %111 = vmatprep.subr.mxu0 %v80
    %112 = vmatpush1.msra.mxu0 %v79
    %113 = vmatprep.subr.mxu0 %v82
    %114 = vmatpush1.msra.mxu0 %v81
    %115 = vmatprep.subr.mxu0 %v84
    %116 = vmatpush1.msra.mxu0 %v83
    %117 = vmatprep.subr.mxu0 %v86
    %118 = vmatpush1.msra.mxu0 %v85
    %119 = vmatprep.subr.mxu0 0.0
    %120 = vmatpush1.msra.mxu0 0.0
    %121 = vmatprep.subr.mxu0 0.0
    %122 = vmatpush1.msra.mxu0 0.0
    %123 = vmatprep.subr.mxu0 0.0
    %124 = vmatpush1.msra.mxu0 0.0
    %125 = vmatprep.subr.mxu0 0.0
    %126 = vmatpush1.msra.mxu0 0.0
    %127 = vmatprep.subr.mxu0 0.0
    %128 = vmatpush1.msra.mxu0 0.0
    %129 = vmatprep.subr.mxu0 0.0
    %130 = vmatpush1.msra.mxu0 0.0
    %131 = vmatprep.subr.mxu0 0.0
    %132 = vmatpush1.msra.mxu0 0.0
    %133 = vmatprep.subr.mxu0 0.0
    %134 = vmatpush1.msra.mxu0 0.0
    %135 = vmatprep.subr.mxu0 0.0
    %136 = vmatpush1.msra.mxu0 0.0
    %137 = vmatprep.subr.mxu0 0.0
    %138 = vmatpush1.msra.mxu0 0.0
    %139 = vmatprep.subr.mxu0 0.0
    %140 = vmatpush1.msra.mxu0 0.0
    %141 = vmatprep.subr.mxu0 0.0
    %142 = vmatpush1.msra.mxu0 0.0
    %143 = vmatprep.subr.mxu0 0.0
    %144 = vmatpush1.msra.mxu0 0.0
    %145 = vmatprep.subr.mxu0 0.0
    %146 = vmatpush1.msra.mxu0 0.0
    %147 = vmatprep.subr.mxu0 0.0
    %148 = vmatpush1.msra.mxu0 0.0
    %149 = vmatprep.subr.mxu0 0.0
    %150 = vmatpush1.msra.mxu0 0.0
    %151 = vmatprep.mubr.f32.mxu0 0.0
    %152 = vmatmul.mubr.f32.gmra.mrb[0].mxu0 %v41
    %v153 = vpop.f32.mrb[0].mxu0
    %v154 = vadd.f32 0.0, %v153
    %v155 = vpop.f32.mrb[0].mxu0
    %v156 = vadd.f32 0.0, %v155
    %157 = vdwg.mxu0
    %v158 = vadd.f32 %v47, %v154
    %v159 = vadd.f32 %v51, %v156
    %v160 = vmul.f32 %v41, 2.0
    %v161 = vmul.f32 %v160, %v41
    %v162 = vsub.f32 %v161, 1.0
    %s163 = scalar_lea.vmem [#allocation5], 512
    %v164 = vld [vmem:[%s163] sm:$0xff]
    %v165 = vld [vmem:[%s163 + $0x8] sm:$0xff]
    %v166 = vld [vmem:[%s163 + $0x10] sm:$0xff]
    %v167 = vld [vmem:[%s163 + $0x18] sm:$0xff]
    %v168 = vld [vmem:[%s163 + $0x20] sm:$0xff]
    %v169 = vld [vmem:[%s163 + $0x28] sm:$0xff]
    %v170 = vld [vmem:[%s163 + $0x30] sm:$0xff]
    %v171 = vld [vmem:[%s163 + $0x38] sm:$0xff]
    %v172 = vld [vmem:[%s163 + $0x40] sm:$0xff]
    %v173 = vld [vmem:[%s163 + $0x48] sm:$0xff]
    %v174 = vld [vmem:[%s163 + $0x50] sm:$0xff]
    %v175 = vld [vmem:[%s163 + $0x58] sm:$0xff]
    %v176 = vld [vmem:[%s163 + $0x60] sm:$0xff]
    %v177 = vld [vmem:[%s163 + $0x68] sm:$0xff]
    %v178 = vld [vmem:[%s163 + $0x70] sm:$0xff]
    %v179 = vld [vmem:[%s163 + $0x78] sm:$0xff]
    %v180 = vld [vmem:[%s163 + $0x80] sm:$0xff]
    %v181 = vld [vmem:[%s163 + $0x88] sm:$0xff]
    %v182 = vld [vmem:[%s163 + $0x90] sm:$0xff]
    %v183 = vld [vmem:[%s163 + $0x98] sm:$0xff]
    %v184 = vld [vmem:[%s163 + $0xa0] sm:$0xff]
    %v185 = vld [vmem:[%s163 + $0xa8] sm:$0xff]
    %v186 = vld [vmem:[%s163 + $0xb0] sm:$0xff]
    %v187 = vld [vmem:[%s163 + $0xb8] sm:$0xff]
    %v188 = vld [vmem:[%s163 + $0xc0] sm:$0xff]
    %v189 = vld [vmem:[%s163 + $0xc8] sm:$0xff]
    %v190 = vld [vmem:[%s163 + $0xd0] sm:$0xff]
    %v191 = vld [vmem:[%s163 + $0xd8] sm:$0xff]
    %v192 = vld [vmem:[%s163 + $0xe0] sm:$0xff]
    %v193 = vld [vmem:[%s163 + $0xe8] sm:$0xff]
    %v194 = vld [vmem:[%s163 + $0xf0] sm:$0xff]
    %v195 = vld [vmem:[%s163 + $0xf8] sm:$0xff]
    %196 = vmatprep.subr.mxu0 %v165
    %197 = vmatpush1.msra.mxu0 %v164
    %198 = vmatprep.subr.mxu0 %v167
    %199 = vmatpush1.msra.mxu0 %v166
    %200 = vmatprep.subr.mxu0 %v169
    %201 = vmatpush1.msra.mxu0 %v168
    %202 = vmatprep.subr.mxu0 %v171
    %203 = vmatpush1.msra.mxu0 %v170
    %204 = vmatprep.subr.mxu0 %v173
    %205 = vmatpush1.msra.mxu0 %v172
    %206 = vmatprep.subr.mxu0 %v175
    %207 = vmatpush1.msra.mxu0 %v174
    %208 = vmatprep.subr.mxu0 %v177
    %209 = vmatpush1.msra.mxu0 %v176
    %210 = vmatprep.subr.mxu0 %v179
    %211 = vmatpush1.msra.mxu0 %v178
    %212 = vmatprep.subr.mxu0 %v181
    %213 = vmatpush1.msra.mxu0 %v180
    %214 = vmatprep.subr.mxu0 %v183
    %215 = vmatpush1.msra.mxu0 %v182
    %216 = vmatprep.subr.mxu0 %v185
    %217 = vmatpush1.msra.mxu0 %v184
    %218 = vmatprep.subr.mxu0 %v187
    %219 = vmatpush1.msra.mxu0 %v186
    %220 = vmatprep.subr.mxu0 %v189
    %221 = vmatpush1.msra.mxu0 %v188
    %222 = vmatprep.subr.mxu0 %v191
    %223 = vmatpush1.msra.mxu0 %v190
    %224 = vmatprep.subr.mxu0 %v193
    %225 = vmatpush1.msra.mxu0 %v192
    %226 = vmatprep.subr.mxu0 %v195
    %227 = vmatpush1.msra.mxu0 %v194
    %228 = vmatprep.subr.mxu0 0.0
    %229 = vmatpush1.msra.mxu0 0.0
    %230 = vmatprep.subr.mxu0 0.0
    %231 = vmatpush1.msra.mxu0 0.0
    %232 = vmatprep.subr.mxu0 0.0
    %233 = vmatpush1.msra.mxu0 0.0
    %234 = vmatprep.subr.mxu0 0.0
    %235 = vmatpush1.msra.mxu0 0.0
    %236 = vmatprep.subr.mxu0 0.0
    %237 = vmatpush1.msra.mxu0 0.0
    %238 = vmatprep.subr.mxu0 0.0
    %239 = vmatpush1.msra.mxu0 0.0
    %240 = vmatprep.subr.mxu0 0.0
    %241 = vmatpush1.msra.mxu0 0.0
    %242 = vmatprep.subr.mxu0 0.0
    %243 = vmatpush1.msra.mxu0 0.0
    %244 = vmatprep.subr.mxu0 0.0
    %245 = vmatpush1.msra.mxu0 0.0
    %246 = vmatprep.subr.mxu0 0.0
    %247 = vmatpush1.msra.mxu0 0.0
    %248 = vmatprep.subr.mxu0 0.0
    %249 = vmatpush1.msra.mxu0 0.0
    %250 = vmatprep.subr.mxu0 0.0
    %251 = vmatpush1.msra.mxu0 0.0
    %252 = vmatprep.subr.mxu0 0.0
    %253 = vmatpush1.msra.mxu0 0.0
    %254 = vmatprep.subr.mxu0 0.0
    %255 = vmatpush1.msra.mxu0 0.0
    %256 = vmatprep.subr.mxu0 0.0
    %257 = vmatpush1.msra.mxu0 0.0
    %258 = vmatprep.subr.mxu0 0.0
    %259 = vmatpush1.msra.mxu0 0.0
    %260 = vmatprep.mubr.f32.mxu0 0.0
    %261 = vmatmul.mubr.f32.gmra.mrb[0].mxu0 %v162
    %v262 = vpop.f32.mrb[0].mxu0
    %v263 = vadd.f32 0.0, %v262
    %v264 = vpop.f32.mrb[0].mxu0
    %v265 = vadd.f32 0.0, %v264
    %266 = vdwg.mxu0
    %v267 = vadd.f32 %v158, %v263
    %v268 = vadd.f32 %v159, %v265
    %v269 = vmul.f32 %v160, %v162
    %v270 = vsub.f32 %v269, %v41
    %s271 = scalar_lea.vmem [#allocation5], 768
    %v272 = vld [vmem:[%s271] sm:$0xff]
    %v273 = vld [vmem:[%s271 + $0x8] sm:$0xff]
    %v274 = vld [vmem:[%s271 + $0x10] sm:$0xff]
    %v275 = vld [vmem:[%s271 + $0x18] sm:$0xff]
    %v276 = vld [vmem:[%s271 + $0x20] sm:$0xff]
    %v277 = vld [vmem:[%s271 + $0x28] sm:$0xff]
    %v278 = vld [vmem:[%s271 + $0x30] sm:$0xff]
    %v279 = vld [vmem:[%s271 + $0x38] sm:$0xff]
    %v280 = vld [vmem:[%s271 + $0x40] sm:$0xff]
    %v281 = vld [vmem:[%s271 + $0x48] sm:$0xff]
    %v282 = vld [vmem:[%s271 + $0x50] sm:$0xff]
    %v283 = vld [vmem:[%s271 + $0x58] sm:$0xff]
    %v284 = vld [vmem:[%s271 + $0x60] sm:$0xff]
    %v285 = vld [vmem:[%s271 + $0x68] sm:$0xff]
    %v286 = vld [vmem:[%s271 + $0x70] sm:$0xff]
    %v287 = vld [vmem:[%s271 + $0x78] sm:$0xff]
    %v288 = vld [vmem:[%s271 + $0x80] sm:$0xff]
    %v289 = vld [vmem:[%s271 + $0x88] sm:$0xff]
    %v290 = vld [vmem:[%s271 + $0x90] sm:$0xff]
    %v291 = vld [vmem:[%s271 + $0x98] sm:$0xff]
    %v292 = vld [vmem:[%s271 + $0xa0] sm:$0xff]
    %v293 = vld [vmem:[%s271 + $0xa8] sm:$0xff]
    %v294 = vld [vmem:[%s271 + $0xb0] sm:$0xff]
    %v295 = vld [vmem:[%s271 + $0xb8] sm:$0xff]
    %v296 = vld [vmem:[%s271 + $0xc0] sm:$0xff]
    %v297 = vld [vmem:[%s271 + $0xc8] sm:$0xff]
    %v298 = vld [vmem:[%s271 + $0xd0] sm:$0xff]
    %v299 = vld [vmem:[%s271 + $0xd8] sm:$0xff]
    %v300 = vld [vmem:[%s271 + $0xe0] sm:$0xff]
    %v301 = vld [vmem:[%s271 + $0xe8] sm:$0xff]
    %v302 = vld [vmem:[%s271 + $0xf0] sm:$0xff]
    %v303 = vld [vmem:[%s271 + $0xf8] sm:$0xff]
    %304 = vmatprep.subr.mxu0 %v273
    %305 = vmatpush1.msra.mxu0 %v272
    %306 = vmatprep.subr.mxu0 %v275
    %307 = vmatpush1.msra.mxu0 %v274
    %308 = vmatprep.subr.mxu0 %v277
    %309 = vmatpush1.msra.mxu0 %v276
    %310 = vmatprep.subr.mxu0 %v279
    %311 = vmatpush1.msra.mxu0 %v278
    %312 = vmatprep.subr.mxu0 %v281
    %313 = vmatpush1.msra.mxu0 %v280
    %314 = vmatprep.subr.mxu0 %v283
    %315 = vmatpush1.msra.mxu0 %v282
    %316 = vmatprep.subr.mxu0 %v285
    %317 = vmatpush1.msra.mxu0 %v284
    %318 = vmatprep.subr.mxu0 %v287
    %319 = vmatpush1.msra.mxu0 %v286
    %320 = vmatprep.subr.mxu0 %v289
    %321 = vmatpush1.msra.mxu0 %v288
    %322 = vmatprep.subr.mxu0 %v291
    %323 = vmatpush1.msra.mxu0 %v290
    %324 = vmatprep.subr.mxu0 %v293
    %325 = vmatpush1.msra.mxu0 %v292
    %326 = vmatprep.subr.mxu0 %v295
    %327 = vmatpush1.msra.mxu0 %v294
    %328 = vmatprep.subr.mxu0 %v297
    %329 = vmatpush1.msra.mxu0 %v296
    %330 = vmatprep.subr.mxu0 %v299
    %331 = vmatpush1.msra.mxu0 %v298
    %332 = vmatprep.subr.mxu0 %v301
    %333 = vmatpush1.msra.mxu0 %v300
    %334 = vmatprep.subr.mxu0 %v303
    %335 = vmatpush1.msra.mxu0 %v302
    %336 = vmatprep.subr.mxu0 0.0
    %337 = vmatpush1.msra.mxu0 0.0
    %338 = vmatprep.subr.mxu0 0.0
    %339 = vmatpush1.msra.mxu0 0.0
    %340 = vmatprep.subr.mxu0 0.0
    %341 = vmatpush1.msra.mxu0 0.0
    %342 = vmatprep.subr.mxu0 0.0
    %343 = vmatpush1.msra.mxu0 0.0
    %344 = vmatprep.subr.mxu0 0.0
    %345 = vmatpush1.msra.mxu0 0.0
    %346 = vmatprep.subr.mxu0 0.0
    %347 = vmatpush1.msra.mxu0 0.0
    %348 = vmatprep.subr.mxu0 0.0
    %349 = vmatpush1.msra.mxu0 0.0
    %350 = vmatprep.subr.mxu0 0.0
    %351 = vmatpush1.msra.mxu0 0.0
    %352 = vmatprep.subr.mxu0 0.0
    %353 = vmatpush1.msra.mxu0 0.0
    %354 = vmatprep.subr.mxu0 0.0
    %355 = vmatpush1.msra.mxu0 0.0
    %356 = vmatprep.subr.mxu0 0.0
    %357 = vmatpush1.msra.mxu0 0.0
    %358 = vmatprep.subr.mxu0 0.0
    %359 = vmatpush1.msra.mxu0 0.0
    %360 = vmatprep.subr.mxu0 0.0
    %361 = vmatpush1.msra.mxu0 0.0
    %362 = vmatprep.subr.mxu0 0.0
    %363 = vmatpush1.msra.mxu0 0.0
    %364 = vmatprep.subr.mxu0 0.0
    %365 = vmatpush1.msra.mxu0 0.0
    %366 = vmatprep.subr.mxu0 0.0
    %367 = vmatpush1.msra.mxu0 0.0
    %368 = vmatprep.mubr.f32.mxu0 0.0
    %369 = vmatmul.mubr.f32.gmra.mrb[0].mxu0 %v270
    %v370 = vpop.f32.mrb[0].mxu0
    %v371 = vadd.f32 0.0, %v370
    %v372 = vpop.f32.mrb[0].mxu0
    %v373 = vadd.f32 0.0, %v372
    %374 = vdwg.mxu0
    %v375 = vadd.f32 %v267, %v371
    %v376 = vadd.f32 %v268, %v373
    %v377 = vmul.f32 %v160, %v270
    %v378 = vsub.f32 %v377, %v162
    %s379 = scalar_lea.vmem [#allocation5], 1024
    %v380 = vld [vmem:[%s379] sm:$0xff]
    %v381 = vld [vmem:[%s379 + $0x8] sm:$0xff]
    %v382 = vld [vmem:[%s379 + $0x10] sm:$0xff]
    %v383 = vld [vmem:[%s379 + $0x18] sm:$0xff]
    %v384 = vld [vmem:[%s379 + $0x20] sm:$0xff]
    %v385 = vld [vmem:[%s379 + $0x28] sm:$0xff]
    %v386 = vld [vmem:[%s379 + $0x30] sm:$0xff]
    %v387 = vld [vmem:[%s379 + $0x38] sm:$0xff]
    %v388 = vld [vmem:[%s379 + $0x40] sm:$0xff]
    %v389 = vld [vmem:[%s379 + $0x48] sm:$0xff]
    %v390 = vld [vmem:[%s379 + $0x50] sm:$0xff]
    %v391 = vld [vmem:[%s379 + $0x58] sm:$0xff]
    %v392 = vld [vmem:[%s379 + $0x60] sm:$0xff]
    %v393 = vld [vmem:[%s379 + $0x68] sm:$0xff]
    %v394 = vld [vmem:[%s379 + $0x70] sm:$0xff]
    %v395 = vld [vmem:[%s379 + $0x78] sm:$0xff]
    %v396 = vld [vmem:[%s379 + $0x80] sm:$0xff]
    %v397 = vld [vmem:[%s379 + $0x88] sm:$0xff]
    %v398 = vld [vmem:[%s379 + $0x90] sm:$0xff]
    %v399 = vld [vmem:[%s379 + $0x98] sm:$0xff]
    %v400 = vld [vmem:[%s379 + $0xa0] sm:$0xff]
    %v401 = vld [vmem:[%s379 + $0xa8] sm:$0xff]
    %v402 = vld [vmem:[%s379 + $0xb0] sm:$0xff]
    %v403 = vld [vmem:[%s379 + $0xb8] sm:$0xff]
    %v404 = vld [vmem:[%s379 + $0xc0] sm:$0xff]
    %v405 = vld [vmem:[%s379 + $0xc8] sm:$0xff]
    %v406 = vld [vmem:[%s379 + $0xd0] sm:$0xff]
    %v407 = vld [vmem:[%s379 + $0xd8] sm:$0xff]
    %v408 = vld [vmem:[%s379 + $0xe0] sm:$0xff]
    %v409 = vld [vmem:[%s379 + $0xe8] sm:$0xff]
    %v410 = vld [vmem:[%s379 + $0xf0] sm:$0xff]
    %v411 = vld [vmem:[%s379 + $0xf8] sm:$0xff]
    %412 = vmatprep.subr.mxu0 %v381
    %413 = vmatpush1.msra.mxu0 %v380
    %414 = vmatprep.subr.mxu0 %v383
    %415 = vmatpush1.msra.mxu0 %v382
    %416 = vmatprep.subr.mxu0 %v385
    %417 = vmatpush1.msra.mxu0 %v384
    %418 = vmatprep.subr.mxu0 %v387
    %419 = vmatpush1.msra.mxu0 %v386
    %420 = vmatprep.subr.mxu0 %v389
    %421 = vmatpush1.msra.mxu0 %v388
    %422 = vmatprep.subr.mxu0 %v391
    %423 = vmatpush1.msra.mxu0 %v390
    %424 = vmatprep.subr.mxu0 %v393
    %425 = vmatpush1.msra.mxu0 %v392
    %426 = vmatprep.subr.mxu0 %v395
    %427 = vmatpush1.msra.mxu0 %v394
    %428 = vmatprep.subr.mxu0 %v397
    %429 = vmatpush1.msra.mxu0 %v396
    %430 = vmatprep.subr.mxu0 %v399
    %431 = vmatpush1.msra.mxu0 %v398
    %432 = vmatprep.subr.mxu0 %v401
    %433 = vmatpush1.msra.mxu0 %v400
    %434 = vmatprep.subr.mxu0 %v403
    %435 = vmatpush1.msra.mxu0 %v402
    %436 = vmatprep.subr.mxu0 %v405
    %437 = vmatpush1.msra.mxu0 %v404
    %438 = vmatprep.subr.mxu0 %v407
    %439 = vmatpush1.msra.mxu0 %v406
    %440 = vmatprep.subr.mxu0 %v409
    %441 = vmatpush1.msra.mxu0 %v408
    %442 = vmatprep.subr.mxu0 %v411
    %443 = vmatpush1.msra.mxu0 %v410
    %444 = vmatprep.subr.mxu0 0.0
    %445 = vmatpush1.msra.mxu0 0.0
    %446 = vmatprep.subr.mxu0 0.0
    %447 = vmatpush1.msra.mxu0 0.0
    %448 = vmatprep.subr.mxu0 0.0
    %449 = vmatpush1.msra.mxu0 0.0
    %450 = vmatprep.subr.mxu0 0.0
    %451 = vmatpush1.msra.mxu0 0.0
    %452 = vmatprep.subr.mxu0 0.0
    %453 = vmatpush1.msra.mxu0 0.0
    %454 = vmatprep.subr.mxu0 0.0
    %455 = vmatpush1.msra.mxu0 0.0
    %456 = vmatprep.subr.mxu0 0.0
    %457 = vmatpush1.msra.mxu0 0.0
    %458 = vmatprep.subr.mxu0 0.0
    %459 = vmatpush1.msra.mxu0 0.0
    %460 = vmatprep.subr.mxu0 0.0
    %461 = vmatpush1.msra.mxu0 0.0
    %462 = vmatprep.subr.mxu0 0.0
    %463 = vmatpush1.msra.mxu0 0.0
    %464 = vmatprep.subr.mxu0 0.0
    %465 = vmatpush1.msra.mxu0 0.0
    %466 = vmatprep.subr.mxu0 0.0
    %467 = vmatpush1.msra.mxu0 0.0
    %468 = vmatprep.subr.mxu0 0.0
    %469 = vmatpush1.msra.mxu0 0.0
    %470 = vmatprep.subr.mxu0 0.0
    %471 = vmatpush1.msra.mxu0 0.0
    %472 = vmatprep.subr.mxu0 0.0
    %473 = vmatpush1.msra.mxu0 0.0
    %474 = vmatprep.subr.mxu0 0.0
    %475 = vmatpush1.msra.mxu0 0.0
    %476 = vmatprep.mubr.f32.mxu0 0.0
    %477 = vmatmul.mubr.f32.gmra.mrb[0].mxu0 %v378
    %v478 = vpop.f32.mrb[0].mxu0
    %v479 = vadd.f32 0.0, %v478
    %v480 = vpop.f32.mrb[0].mxu0
    %v481 = vadd.f32 0.0, %v480
    %482 = vdwg.mxu0
    %v483 = vadd.f32 %v375, %v479
    %v484 = vadd.f32 %v376, %v481
    %485 = vst [vmem:[#allocation7] sm:$0xff] %v483
    %486 = vst [vmem:[#allocation7 + $0x8] sm:$0xff] %v484
    // Predicated region
    $region22: #{tpu_custom_call.1} parent=1 // pred_check
      _
    $region23: #{tpu_custom_call.1} parent=1 // pred_check_branch
      %488 = sbr.rel (0) target = $region25
    $region24: #{tpu_custom_call.1} parent=1 // pred_region
      %s490 = ssub.s32 256, 256
      %491 = vsyncadd [#allocation4], %s490
      %s493 = sshll.u32 [#allocation7], 4
      %s494 = int_to_ptr.vmem [resolvable:$true] %s493
      %496 = dma.vmem_to_hbm [thread:$0]  %s494, 256, %s3, [#allocation4]
    $region25: #{tpu_custom_call.1} parent=1 // pred_fallthru
      _
    // Predicated region
    $region26: #{tpu_custom_call.1} parent=1 // pred_check
      _
    $region27: #{tpu_custom_call.1} parent=1 // pred_check_branch
      %498 = sbr.rel (0) target = $region29
    $region28: #{tpu_custom_call.1} parent=1 // pred_region
      %499 = dma.done [#allocation4], 256
    $region29: #{tpu_custom_call.1} parent=1 // pred_fallthru
      _
    %500 = vsyncpa [#allocation3], 1
    %501 = vsyncpa [#allocation6], 1
    %502 = vsyncpa [#allocation4], 1

</llo_original>
